<compile_context>
chip_gen: v5e
topology: v5e:2x2
jax: 0.10.0
libtpu: 0.0.40
codegen_flags: <defaults>
</compile_context>

<pallas_src>
import functools

import jax
import jax.numpy as jnp
import numpy as np
from jax.experimental import pallas as pl
from jax.experimental.pallas import tpu as pltpu


def _attention_kernel(x_ref, dec_ref, v_ref, w1_ref, w2t_ref, out_ref, *,
                      matmul_dtype, activation_dtype):
    # x_ref   : (Bb, H, S)  static hidden, NATIVE layout (hidden on sublanes, seq on lanes)
    # dec_ref : (Bb, H)     decoder hidden
    # v_ref   : (1, H)      shared parameter v (kept f32; VPU path)
    # w1_ref  : (H, H)      W[:, :H]    (static part of W)
    # w2t_ref : (H, H)      W[:, H:]^T  (decoder part of W)
    # out_ref : (Bb, S)     softmax attention weights (S on lanes -> lane-dense store)
    bb, h, s = x_ref.shape

    # In-VMEM casts for the MXU (no extra HBM pass; VPU work hides under the matmul).
    x = x_ref[...].astype(matmul_dtype)          # (Bb, H, S)
    dec = dec_ref[...].astype(matmul_dtype)      # (Bb, H)

    # Main batched MXU matmul in the native layout: pre[b] = W1 @ x[b] -> (Bb, H, S),
    # f32 accumulation. (W1 is broadcast along the batch block; tiny HxH per element.)
    w1b = jnp.broadcast_to(w1_ref[...][None], (bb, h, h))
    pre = jnp.einsum("bij,bjs->bis", w1b, x, preferred_element_type=jnp.float32)

    # Decoder contribution is S-independent: bias = dec @ W2^T -> (Bb, H), f32 acc.
    bias = jnp.dot(dec, w2t_ref[...], preferred_element_type=jnp.float32)

    # tanh(W1 @ static + W2 @ dec); bias broadcast along the sequence (lane) axis.
    z = pre + bias[:, :, None]                   # (Bb, H, S) f32
    if activation_dtype == jnp.bfloat16:
        # v6e/v7x only (bf16 EUP/VPU): halves EUP work + vreg pressure of the big temp.
        # Do NOT select this on v5e (no bf16 VPU/EUP).
        t = jnp.tanh(z.astype(jnp.bfloat16))
        weighted = t * v_ref[...][:, :, None].astype(jnp.bfloat16)
        scores = jnp.sum(weighted, axis=1, dtype=jnp.float32)        # (Bb, S)
    else:
        t = jnp.tanh(z)
        scores = jnp.sum(t * v_ref[...][:, :, None], axis=1)         # (Bb, S)

    # Numerically-stable softmax over S (lane axis); EUP approximate reciprocal.
    # NOTE: approx=True -> rows sum to 1 only to ~2^-12 relative accuracy.
    m = jnp.max(scores, axis=-1, keepdims=True)
    e = jnp.exp(scores - m)
    denom = jnp.sum(e, axis=-1, keepdims=True)
    out_ref[...] = (e * pl.reciprocal(denom, approx=True)).astype(out_ref.dtype)


def _auto_b_blk(b, h, s):
    """Batch elements per grid step.

    Constraints / goals:
      * b_blk == b, or a multiple of 8 that divides b (BlockSpec sublane rule for the
        (b_blk, H) / (b_blk, S) blocks),
      * prefer >= 4 grid steps (full DMA/compute overlap; v7x dual-TC sharding),
      * keep the per-step f32 static block around ~2 MiB so double-buffering plus the
        f32 intermediates stays well inside every generation's scoped-VMEM budget.
    """
    if b <= 8:
        return b
    cands = [m for m in range(8, b + 1, 8) if b % m == 0]
    if not cands:
        return b                                   # cannot split legally; one block
    target = 2 << 20                               # ~2 MiB of f32 static block / step
    fitting = [m for m in cands if m * h * s * 4 <= target] or [min(cands)]
    for min_steps in (4, 2, 1):
        pool = [m for m in fitting if b // m >= min_steps]
        if pool:
            return max(pool)
    return min(cands)


def _vmem_limit_bytes(b_blk, h, s, mm_itemsize):
    """Explicit scoped-VMEM budget (double-buffered inputs + f32 intermediates)."""
    x_blk = b_blk * h * s * 4                                  # f32 input block
    inter = b_blk * h * s * (mm_itemsize + 4 + 4)              # cast copy + pre + tanh
    est = (2 * x_blk + inter
           + 2 * b_blk * h * 4 + b_blk * h * mm_itemsize       # dec (2 bufs) + cast
           + 2 * 2 * h * h * mm_itemsize + 2 * h * 4           # W1, W2^T, v (2 bufs each)
           + 2 * b_blk * s * 4 + 4 * b_blk * s * 4)            # out bufs + softmax temps
    return int(min(max(2 * est, 32 << 20), 64 << 20))          # stay v7x-safe (64 MiB)


def _cost_estimate(b, h, s, mm_itemsize):
    flops = 2 * b * s * h * h + 2 * b * h * h + 4 * b * s * h
    transcendentals = b * s * h + b * s + b                    # tanh + exp + recip
    bytes_accessed = (b * h * s * 4 + b * h * 4                # activations (f32 in HBM)
                      + 2 * h * h * mm_itemsize + h * 4        # weights + v
                      + b * s * 4)                             # output
    return pl.CostEstimate(flops=int(flops), transcendentals=int(transcendentals),
                           bytes_accessed=int(bytes_accessed))


def attention_forward(static_hidden, decoder_hidden, v_param, w_param, *,
                      b_blk=None, use_bf16_matmul=True,
                      activation_dtype=jnp.float32):
    """static_hidden: (B, H, S) f32; decoder_hidden: (B, H) f32;
    v_param: (1, 1, H); w_param: (1, H, 2H).  Returns (B, 1, S) f32.

    use_bf16_matmul : cast MXU inputs to bf16 in-kernel (f32 accumulation). Softmax
                      math stays f32. Set False if the accuracy budget is < ~1e-3.
    activation_dtype: jnp.bfloat16 runs the tanh / v-mult in bf16 (v6e/v7x only;
                      keep f32 on v5e which has no bf16 VPU/EUP).
    """
    b, h, s = static_hidden.shape
    if decoder_hidden.shape != (b, h):
        raise ValueError("decoder_hidden must have shape (B, H)")

    # ---- tiny wrapper-side weight prep (HxH arrays; no pass over static_hidden) ----
    mm_dtype = jnp.bfloat16 if use_bf16_matmul else jnp.float32
    w2d = w_param.reshape(h, 2 * h)
    w1 = w2d[:, :h].astype(mm_dtype)          # (H, H): multiplies static_hidden as-is
    w2t = w2d[:, h:].T.astype(mm_dtype)       # (H, H): dec @ W2^T gives the decoder bias
    v2d = v_param.reshape(1, h).astype(jnp.float32)

    if b_blk is None:
        b_blk = _auto_b_blk(b, h, s)
    if b % b_blk != 0:
        raise ValueError("b_blk must divide the batch size")
    if b_blk != b and b_blk % 8 != 0:
        raise ValueError("b_blk must be a multiple of 8 (or the full batch)")
    num_blocks = b // b_blk

    mm_itemsize = jnp.dtype(mm_dtype).itemsize
    kernel = functools.partial(_attention_kernel, matmul_dtype=mm_dtype,
                               activation_dtype=activation_dtype)

    out2d = pl.pallas_call(
        kernel,
        out_shape=jax.ShapeDtypeStruct((b, s), jnp.float32),
        grid_spec=pltpu.PrefetchScalarGridSpec(
            num_scalar_prefetch=0,
            grid=(num_blocks,),
            in_specs=[
                pl.BlockSpec((b_blk, h, s), lambda i: (i, 0, 0)),  # static hidden (native layout)
                pl.BlockSpec((b_blk, h), lambda i: (i, 0)),        # decoder hidden
                pl.BlockSpec((1, h), lambda i: (0, 0)),            # v      (grid-invariant)
                pl.BlockSpec((h, h), lambda i: (0, 0)),            # W1     (grid-invariant)
                pl.BlockSpec((h, h), lambda i: (0, 0)),            # W2^T   (grid-invariant)
            ],
            out_specs=pl.BlockSpec((b_blk, s), lambda i: (i, 0)),
        ),
        compiler_params=pltpu.CompilerParams(
            # Multi-step batch axis shards across the two v7x TensorCores.
            dimension_semantics=("parallel",),
            vmem_limit_bytes=_vmem_limit_bytes(b_blk, h, s, mm_itemsize),
        ),
        cost_estimate=_cost_estimate(b, h, s, mm_itemsize),
    )(static_hidden, decoder_hidden, v2d, w1, w2t)

    return out2d[:, None, :]   # (B, 1, S), matching the PyTorch module


def attention_reference(static_hidden, decoder_hidden, v_param, w_param):
    b, h, s = static_hidden.shape
    dec = jnp.broadcast_to(decoder_hidden[:, :, None], (b, h, s))
    hidden = jnp.concatenate([static_hidden, dec], axis=1)           # (B, 2H, S)
    w = jnp.broadcast_to(w_param, (b, h, 2 * h))
    v = jnp.broadcast_to(v_param, (b, 1, h))
    attns = jnp.einsum("bij,bjk->bik", v,
                       jnp.tanh(jnp.einsum("bij,bjk->bik", w, hidden)))
    return jax.nn.softmax(attns, axis=2)


if __name__ == "__main__":
    B, H, S = 2, 32, 8

    key = jax.random.PRNGKey(0)
    k1, k2, k3, k4 = jax.random.split(key, 4)

    static_hidden = jax.random.normal(k1, (B, H, S), dtype=jnp.float32)
    decoder_hidden = jax.random.normal(k2, (B, H), dtype=jnp.float32)

    # nn.Parameter shapes from __init__ (zeros there; deterministic randoms here so the
    # softmax is non-trivial).
    v_param = 0.1 * jax.random.normal(k3, (1, 1, H), dtype=jnp.float32)
    w_param = 0.1 * jax.random.normal(k4, (1, H, 2 * H), dtype=jnp.float32)

    ref = attention_reference(static_hidden, decoder_hidden, v_param, w_param)

    # f32 MXU path: tight check (tolerance limited by the EUP approximate reciprocal).
    out_f32 = jax.block_until_ready(
        attention_forward(static_hidden, decoder_hidden, v_param, w_param,
                          use_bf16_matmul=False))
    assert out_f32.shape == (B, 1, S)
    assert np.allclose(np.asarray(out_f32), np.asarray(ref), atol=1e-3, rtol=1e-3)

    # Default path (bf16 MXU inputs, f32 accumulation / softmax): relaxed tolerance.
    out = jax.block_until_ready(
        attention_forward(static_hidden, decoder_hidden, v_param, w_param))
    assert out.shape == (B, 1, S)
    assert np.allclose(np.asarray(out), np.asarray(ref), atol=2e-2, rtol=2e-2)

    print("KERNEL_OK")
</pallas_src>

<mosaic_0001>
module attributes {stable_mosaic.version = 11 : i64} {
  func.func @_attention_kernel(%arg0: i32, %arg1: memref<2x32x8xf32, #tpu.memory_space<vmem>>, %arg2: memref<2x32xf32, #tpu.memory_space<vmem>>, %arg3: memref<1x32xf32, #tpu.memory_space<vmem>>, %arg4: memref<32x32xf32, #tpu.memory_space<vmem>>, %arg5: memref<32x32xf32, #tpu.memory_space<vmem>>, %arg6: memref<2x8xf32, #tpu.memory_space<vmem>>) attributes {dimension_semantics = [#tpu.dimension_semantics<parallel>], iteration_bounds = array<i64: 1>, scalar_prefetch = 0 : i64, scratch_operands = 0 : i64, tpu.core_type = #tpu.core_type<tc>, window_params = [{transform_indices = @transform_0, window_bounds = array<i64: 2, 32, 8>}, {transform_indices = @transform_1, window_bounds = array<i64: 2, 32>}, {pipeline_mode = #tpu.pipeline_mode<synchronous>, transform_indices = @transform_2, window_bounds = array<i64: 1, 32>}, {pipeline_mode = #tpu.pipeline_mode<synchronous>, transform_indices = @transform_3, window_bounds = array<i64: 32, 32>}, {pipeline_mode = #tpu.pipeline_mode<synchronous>, transform_indices = @transform_4, window_bounds = array<i64: 32, 32>}, {transform_indices = @transform_5, window_bounds = array<i64: 2, 8>}]} {
    %c0 = arith.constant 0 : index
    %c0_0 = arith.constant 0 : index
    %c0_1 = arith.constant 0 : index
    %0 = vector.load %arg1[%c0, %c0_0, %c0_1] : memref<2x32x8xf32, #tpu.memory_space<vmem>>, vector<2x32x8xf32>
    %c0_2 = arith.constant 0 : index
    %c0_3 = arith.constant 0 : index
    %1 = vector.load %arg2[%c0_2, %c0_3] : memref<2x32xf32, #tpu.memory_space<vmem>>, vector<2x32xf32>
    %c0_4 = arith.constant 0 : index
    %c0_5 = arith.constant 0 : index
    %2 = vector.load %arg4[%c0_4, %c0_5] : memref<32x32xf32, #tpu.memory_space<vmem>>, vector<32x32xf32>
    %3 = vector.shape_cast %2 : vector<32x32xf32> to vector<1x32x32xf32>
    %4 = vector.shape_cast %3 : vector<1x32x32xf32> to vector<1x32x32xf32>
    %5 = vector.broadcast %4 : vector<1x32x32xf32> to vector<2x32x32xf32>
    "tpu.trace_start"() <{level = 10 : i32, message = "bij,bjs->bis"}> : () -> ()
    %cst = arith.constant dense<0.000000e+00> : vector<2x32x8xf32>
    %6 = tpu.matmul %5, %0, %cst {dimension_numbers = #tpu.dot_dimension_numbers<[2], [1], [1], [2], [0, 0, 0, 1, 1, 2], [0], [0]>} : vector<2x32x32xf32>, vector<2x32x8xf32>, vector<2x32x8xf32> -> vector<2x32x8xf32>
    "tpu.trace_stop"() : () -> ()
    %c0_6 = arith.constant 0 : index
    %c0_7 = arith.constant 0 : index
    %7 = vector.load %arg5[%c0_6, %c0_7] : memref<32x32xf32, #tpu.memory_space<vmem>>, vector<32x32xf32>
    %cst_8 = arith.constant dense<0.000000e+00> : vector<2x32xf32>
    %8 = tpu.matmul %1, %7, %cst_8 {dimension_numbers = #tpu.dot_dimension_numbers<[1], [0], [0], [1], [0, 0, 1, 1], [], []>} : vector<2x32xf32>, vector<32x32xf32>, vector<2x32xf32> -> vector<2x32xf32>
    %9 = vector.shape_cast %8 : vector<2x32xf32> to vector<2x32x1xf32>
    %10 = vector.broadcast %9 : vector<2x32x1xf32> to vector<2x32x8xf32>
    %11 = arith.addf %6, %10 : vector<2x32x8xf32>
    %12 = math.tanh %11 : vector<2x32x8xf32>
    %c0_9 = arith.constant 0 : index
    %c0_10 = arith.constant 0 : index
    %13 = vector.load %arg3[%c0_9, %c0_10] : memref<1x32xf32, #tpu.memory_space<vmem>>, vector<1x32xf32>
    %14 = vector.shape_cast %13 : vector<1x32xf32> to vector<1x32x1xf32>
    %15 = vector.broadcast %14 : vector<1x32x1xf32> to vector<2x32x8xf32>
    %16 = arith.mulf %12, %15 : vector<2x32x8xf32>
    %cst_11 = arith.constant dense<0.000000e+00> : vector<2x8xf32>
    %17 = vector.multi_reduction <add>, %16, %cst_11 [1] : vector<2x32x8xf32> to vector<2x8xf32>
    %cst_12 = arith.constant dense<0xFF800000> : vector<2xf32>
    %18 = vector.multi_reduction <maximumf>, %17, %cst_12 [1] : vector<2x8xf32> to vector<2xf32>
    %19 = vector.shape_cast %18 : vector<2xf32> to vector<2x1xf32>
    %20 = vector.broadcast %19 : vector<2x1xf32> to vector<2x8xf32>
    %21 = arith.subf %17, %20 : vector<2x8xf32>
    %22 = math.exp %21 : vector<2x8xf32>
    %cst_13 = arith.constant dense<0.000000e+00> : vector<2xf32>
    %23 = vector.multi_reduction <add>, %22, %cst_13 [1] : vector<2x8xf32> to vector<2xf32>
    %24 = vector.shape_cast %23 : vector<2xf32> to vector<2x1xf32>
    %25 = tpu.reciprocal %24 {approx = true} : vector<2x1xf32> -> vector<2x1xf32>
    %26 = vector.broadcast %25 : vector<2x1xf32> to vector<2x8xf32>
    %27 = arith.mulf %22, %26 : vector<2x8xf32>
    %c0_14 = arith.constant 0 : index
    %c0_15 = arith.constant 0 : index
    %28 = vector.load %arg6[%c0_14, %c0_15] : memref<2x8xf32, #tpu.memory_space<vmem>>, vector<2x8xf32>
    tpu.vector_store %arg6[%c0_14, %c0_15], %27 {strides = array<i32>} : memref<2x8xf32, #tpu.memory_space<vmem>>, vector<2x8xf32>,
    return
  }
  func.func @transform_0(%arg0: i32) -> (i32, i32, i32) {
    %c0_i32 = arith.constant 0 : i32
    %c0_i32_0 = arith.constant 0 : i32
    %c0_i32_1 = arith.constant 0 : i32
    return %arg0, %c0_i32, %c0_i32_0 : i32, i32, i32
  }
  func.func @transform_1(%arg0: i32) -> (i32, i32) {
    %c0_i32 = arith.constant 0 : i32
    %c0_i32_0 = arith.constant 0 : i32
    return %arg0, %c0_i32 : i32, i32
  }
  func.func @transform_2(%arg0: i32) -> (i32, i32) {
    %c0_i32 = arith.constant 0 : i32
    %c0_i32_0 = arith.constant 0 : i32
    %c0_i32_1 = arith.constant 0 : i32
    return %c0_i32, %c0_i32_0 : i32, i32
  }
  func.func @transform_3(%arg0: i32) -> (i32, i32) {
    %c0_i32 = arith.constant 0 : i32
    %c0_i32_0 = arith.constant 0 : i32
    %c0_i32_1 = arith.constant 0 : i32
    return %c0_i32, %c0_i32_0 : i32, i32
  }
  func.func @transform_4(%arg0: i32) -> (i32, i32) {
    %c0_i32 = arith.constant 0 : i32
    %c0_i32_0 = arith.constant 0 : i32
    %c0_i32_1 = arith.constant 0 : i32
    return %c0_i32, %c0_i32_0 : i32, i32
  }
  func.func @transform_5(%arg0: i32) -> (i32, i32) {
    %c0_i32 = arith.constant 0 : i32
    %c0_i32_0 = arith.constant 0 : i32
    return %arg0, %c0_i32 : i32, i32
  }
}

</mosaic_0001>

<llo_original>
// kernel: tpu_custom_call.1
$region0: #{tpu_custom_call.1}
  #allocation0 [shape = 'u32[]', space=smem, size = 0x4, offset = 0x4, fixed_abs, tag = 'smem constant byte address 0x4 - core index']
  #allocation1 [shape = 'u32[72,128]{1,0:T(1,128)}', space=vmem, size = 0x9000, scoped, tag = 'internal scratch']
  %s0 = inlined_call_operand.vmem [shape: f32[2,32,8], index: 0, kind: input, shape index: {}]
  %s1 = inlined_call_operand.vmem [shape: f32[2,32], index: 1, kind: input, shape index: {}]
  %s2 = inlined_call_operand.vmem [shape: f32[1,32], index: 2, kind: input, shape index: {}]
  %s3 = inlined_call_operand.vmem [shape: f32[32,32], index: 3, kind: input, shape index: {}]
  %s4 = inlined_call_operand.vmem [shape: f32[32,32], index: 4, kind: input, shape index: {}]
  %s5 = inlined_call_operand.hbm [shape: f32[2,8], index: 5, kind: output, shape index: {}]
  %s6 = sld [smem:[#allocation0]]
  $region30: #{tpu_custom_call.1} parent=0
    _
  %s8 = ssub.s32 1, %s6
  %s9 = scalar_select 0, %s8, %s6
  $region1: #{tpu_custom_call.1} parent=0
    #allocation2 [shape = 'u8[1024]{0}', space=vmem, size = 0x400, scoped, tag = 'output window, operand 0, single buffered']
    #allocation3 [shape = 's32[1]{0}', space=sflag, size = 0x4, scoped, tag = 'scoped memory for tpu_custom_call.1']
    %10 = vsyncpa [#allocation3], 0
    // Predicated region
    $region2: #{tpu_custom_call.1} parent=1 // pred_check
      _
    $region3: #{tpu_custom_call.1} parent=1 // pred_check_branch
      %12 = sbr.rel (0) target = $region5
    $region4: #{tpu_custom_call.1} parent=1 // pred_region
      _
    $region5: #{tpu_custom_call.1} parent=1 // pred_fallthru
      _
    // Predicated region
    $region6: #{tpu_custom_call.1} parent=1 // pred_check
      _
    $region7: #{tpu_custom_call.1} parent=1 // pred_check_branch
      %14 = sbr.rel (0) target = $region9
    $region8: #{tpu_custom_call.1} parent=1 // pred_region
      _
    $region9: #{tpu_custom_call.1} parent=1 // pred_fallthru
      _
    // Predicated region
    $region10: #{tpu_custom_call.1} parent=1 // pred_check
      _
    $region11: #{tpu_custom_call.1} parent=1 // pred_check_branch
      %16 = sbr.rel (0) target = $region13
    $region12: #{tpu_custom_call.1} parent=1 // pred_region
      _
    $region13: #{tpu_custom_call.1} parent=1 // pred_fallthru
      _
    // Predicated region
    $region14: #{tpu_custom_call.1} parent=1 // pred_check
      _
    $region15: #{tpu_custom_call.1} parent=1 // pred_check_branch
      %18 = sbr.rel (0) target = $region17
    $region16: #{tpu_custom_call.1} parent=1 // pred_region
      _
    $region17: #{tpu_custom_call.1} parent=1 // pred_fallthru
      _
    // Predicated region
    $region18: #{tpu_custom_call.1} parent=1 // pred_check
      _
    $region19: #{tpu_custom_call.1} parent=1 // pred_check_branch
      %20 = sbr.rel (0) target = $region21
    $region20: #{tpu_custom_call.1} parent=1 // pred_region
      _
    $region21: #{tpu_custom_call.1} parent=1 // pred_fallthru
      _
    %v21 = vld [vmem:[%s0] sm:$0xff]
    %v22 = vld [vmem:[%s0 + $0x8] sm:$0xff]
    %v23 = vld [vmem:[%s0 + $0x10] sm:$0xff]
    %v24 = vld [vmem:[%s0 + $0x18] sm:$0xff]
    %v25 = vld [vmem:[%s0 + $0x20] sm:$0xff]
    %v26 = vld [vmem:[%s0 + $0x28] sm:$0xff]
    %v27 = vld [vmem:[%s0 + $0x30] sm:$0xff]
    %v28 = vld [vmem:[%s0 + $0x38] sm:$0xff]
    %v29 = vld [vmem:[%s1] sm:$0x3]
    %v30 = vld [vmem:[%s3] sm:$0xff]
    %v31 = vld [vmem:[%s3 + $0x8] sm:$0xff]
    %v32 = vld [vmem:[%s3 + $0x10] sm:$0xff]
    %v33 = vld [vmem:[%s3 + $0x18] sm:$0xff]
    %v34 = vld [vmem:[%s4] sm:$0xff]
    %v35 = vld [vmem:[%s4 + $0x8] sm:$0xff]
    %v36 = vld [vmem:[%s4 + $0x10] sm:$0xff]
    %v37 = vld [vmem:[%s4 + $0x18] sm:$0xff]
    %vm38 = vcmask 261120
    %v40 = vsel %vm38, %v29, 0
    %42 = vmatpush.msra.mxu0 0.0
    %43 = vmatpush.msra.mxu0 0.0
    %44 = vmatpush.msra.mxu0 0.0
    %45 = vmatpush.msra.mxu0 0.0
    %46 = vmatpush.msra.mxu0 0.0
    %47 = vmatpush.msra.mxu0 0.0
    %48 = vmatpush.msra.mxu0 0.0
    %49 = vmatpush.msra.mxu0 0.0
    %50 = vmatpush.msra.mxu0 0.0
    %51 = vmatpush.msra.mxu0 0.0
    %52 = vmatpush.msra.mxu0 0.0
    %53 = vmatpush.msra.mxu0 0.0
    %54 = vmatpush.msra.mxu0 %v37
    %55 = vmatpush.msra.mxu0 %v36
    %56 = vmatpush.msra.mxu0 %v35
    %57 = vmatpush.msra.mxu0 %v34
    %58 = vmatmul.f32.gmra.mxu0 %v40
    %v59 = vpop.f32.mrf.mxu0
    %v60 = vadd.f32 0.0, %v59
    %61 = vdwg.mxu0
    %v62 = vperm.slane %v60, 0
    %v63 = vlaneseq
    %v64 = vshrl.u32 %v63, 7
    %66 = vset.pattern.permute.xlu0 %v64
    %67 = vperm.xlu0 %66, %v62
    %v68 = vpop.permute.xlu0 %67
    %v69 = vlaneseq
    %v70 = vshrl.u32 %v69, 7
    %v71 = vadd.s32 %v70, 8
    %72 = vset.pattern.permute.xlu0 %v71
    %73 = vperm.xlu0 %72, %v62
    %v74 = vpop.permute.xlu0 %73
    %v75 = vlaneseq
    %v76 = vshrl.u32 %v75, 7
    %v77 = vadd.s32 %v76, 16
    %78 = vset.pattern.permute.xlu0 %v77
    %79 = vperm.xlu0 %78, %v62
    %v80 = vpop.permute.xlu0 %79
    %v81 = vlaneseq
    %v82 = vshrl.u32 %v81, 7
    %v83 = vadd.s32 %v82, 24
    %84 = vset.pattern.permute.xlu0 %v83
    %85 = vperm.xlu0 %84, %v62
    %v86 = vpop.permute.xlu0 %85
    %v87 = vperm.slane %v60, 1
    %v88 = vlaneseq
    %v89 = vshrl.u32 %v88, 7
    %91 = vset.pattern.permute.xlu0 %v89
    %92 = vperm.xlu0 %91, %v87
    %v93 = vpop.permute.xlu0 %92
    %v94 = vlaneseq
    %v95 = vshrl.u32 %v94, 7
    %v96 = vadd.s32 %v95, 8
    %97 = vset.pattern.permute.xlu0 %v96
    %98 = vperm.xlu0 %97, %v87
    %v99 = vpop.permute.xlu0 %98
    %v100 = vlaneseq
    %v101 = vshrl.u32 %v100, 7
    %v102 = vadd.s32 %v101, 16
    %103 = vset.pattern.permute.xlu0 %v102
    %104 = vperm.xlu0 %103, %v87
    %v105 = vpop.permute.xlu0 %104
    %v106 = vlaneseq
    %v107 = vshrl.u32 %v106, 7
    %v108 = vadd.s32 %v107, 24
    %109 = vset.pattern.permute.xlu0 %v108
    %110 = vperm.xlu0 %109, %v87
    %v111 = vpop.permute.xlu0 %110
    %v113 = vsel %vm38, %v30, 0
    %v116 = vsel %vm38, %v31, 0
    %v119 = vsel %vm38, %v32, 0
    %v122 = vsel %vm38, %v33, 0
    %124 = vmatpush.msra.mxu0 0.0
    %125 = vmatpush.msra.mxu0 0.0
    %126 = vmatpush.msra.mxu0 0.0
    %127 = vmatpush.msra.mxu0 0.0
    %128 = vmatpush.msra.mxu0 0.0
    %129 = vmatpush.msra.mxu0 0.0
    %130 = vmatpush.msra.mxu0 0.0
    %131 = vmatpush.msra.mxu0 0.0
    %132 = vmatpush.msra.mxu0 0.0
    %133 = vmatpush.msra.mxu0 0.0
    %134 = vmatpush.msra.mxu0 0.0
    %135 = vmatpush.msra.mxu0 0.0
    %136 = vmatpush.msra.mxu0 %v24
    %137 = vmatpush.msra.mxu0 %v23
    %138 = vmatpush.msra.mxu0 %v22
    %139 = vmatpush.msra.mxu0 %v21
    %140 = vmatmul.f32.gmra.mxu0 %v113
    %v141 = vpop.f32.mrf.mxu0
    %v142 = vadd.f32 %v68, %v141
    %143 = vmatmul.f32.gmra.mxu0 %v116
    %v144 = vpop.f32.mrf.mxu0
    %v145 = vadd.f32 %v74, %v144
    %146 = vmatmul.f32.gmra.mxu0 %v119
    %v147 = vpop.f32.mrf.mxu0
    %v148 = vadd.f32 %v80, %v147
    %149 = vmatmul.f32.gmra.mxu0 %v122
    %v150 = vpop.f32.mrf.mxu0
    %v151 = vadd.f32 %v86, %v150
    %152 = vdwg.mxu0
    %153 = vmatpush.msra.mxu0 0.0
    %154 = vmatpush.msra.mxu0 0.0
    %155 = vmatpush.msra.mxu0 0.0
    %156 = vmatpush.msra.mxu0 0.0
    %157 = vmatpush.msra.mxu0 0.0
    %158 = vmatpush.msra.mxu0 0.0
    %159 = vmatpush.msra.mxu0 0.0
    %160 = vmatpush.msra.mxu0 0.0
    %161 = vmatpush.msra.mxu0 0.0
    %162 = vmatpush.msra.mxu0 0.0
    %163 = vmatpush.msra.mxu0 0.0
    %164 = vmatpush.msra.mxu0 0.0
    %165 = vmatpush.msra.mxu0 %v28
    %166 = vmatpush.msra.mxu0 %v27
    %167 = vmatpush.msra.mxu0 %v26
    %168 = vmatpush.msra.mxu0 %v25
    %169 = vmatmul.f32.gmra.mxu0 %v113
    %v170 = vpop.f32.mrf.mxu0
    %v171 = vadd.f32 %v93, %v170
    %172 = vmatmul.f32.gmra.mxu0 %v116
    %v173 = vpop.f32.mrf.mxu0
    %v174 = vadd.f32 %v99, %v173
    %175 = vmatmul.f32.gmra.mxu0 %v119
    %v176 = vpop.f32.mrf.mxu0
    %v177 = vadd.f32 %v105, %v176
    %178 = vmatmul.f32.gmra.mxu0 %v122
    %v179 = vpop.f32.mrf.mxu0
    %v180 = vadd.f32 %v111, %v179
    %181 = vdwg.mxu0
    %v182 = vtanh.pop %v142
    %v183 = vtanh.pop %v145
    %v184 = vtanh.pop %v148
    %v185 = vtanh.pop %v151
    %v186 = vtanh.pop %v171
    %v187 = vtanh.pop %v174
    %v188 = vtanh.pop %v177
    %v189 = vtanh.pop %v180
    %v190 = vld [vmem:[%s2] sm:$0x1]
    %v191 = vperm.slane %v190, 0
    %v192 = vlaneseq
    %v193 = vshrl.u32 %v192, 7
    %195 = vset.pattern.permute.xlu0 %v193
    %196 = vperm.xlu0 %195, %v191
    %v197 = vpop.permute.xlu0 %196
    %v198 = vlaneseq
    %v199 = vshrl.u32 %v198, 7
    %v200 = vadd.s32 %v199, 8
    %201 = vset.pattern.permute.xlu0 %v200
    %202 = vperm.xlu0 %201, %v191
    %v203 = vpop.permute.xlu0 %202
    %v204 = vlaneseq
    %v205 = vshrl.u32 %v204, 7
    %v206 = vadd.s32 %v205, 16
    %207 = vset.pattern.permute.xlu0 %v206
    %208 = vperm.xlu0 %207, %v191
    %v209 = vpop.permute.xlu0 %208
    %v210 = vlaneseq
    %v211 = vshrl.u32 %v210, 7
    %v212 = vadd.s32 %v211, 24
    %213 = vset.pattern.permute.xlu0 %v212
    %214 = vperm.xlu0 %213, %v191
    %v215 = vpop.permute.xlu0 %214
    %v216 = vmul.f32 %v182, %v197
    %v217 = vmul.f32 %v183, %v203
    %v218 = vmul.f32 %v184, %v209
    %v219 = vmul.f32 %v185, %v215
    %v220 = vmul.f32 %v186, %v197
    %v221 = vmul.f32 %v187, %v203
    %v222 = vmul.f32 %v188, %v209
    %v223 = vmul.f32 %v189, %v215
    %vm224 = vcmask 64512
    %v225 = vsel %vm224, %v216, 0.0
    %v226 = vsel %vm224, %v217, 0.0
    %v227 = vadd.f32 %v225, %v226
    %v228 = vsel %vm224, %v218, 0.0
    %v229 = vadd.f32 %v227, %v228
    %v230 = vsel %vm224, %v219, 0.0
    %v231 = vadd.f32 %v229, %v230
    %v232 = vrot.slane %v231, 4
    %v233 = vadd.f32 %v231, %v232
    %v234 = vrot.slane %v233, 2
    %v235 = vadd.f32 %v233, %v234
    %v236 = vrot.slane %v235, 1
    %v237 = vadd.f32 %v235, %v236
    %v238 = vsel %vm224, %v220, 0.0
    %v239 = vsel %vm224, %v221, 0.0
    %v240 = vadd.f32 %v238, %v239
    %v241 = vsel %vm224, %v222, 0.0
    %v242 = vadd.f32 %v240, %v241
    %v243 = vsel %vm224, %v223, 0.0
    %v244 = vadd.f32 %v242, %v243
    %v245 = vrot.slane %v244, 4
    %v246 = vadd.f32 %v244, %v245
    %v247 = vrot.slane %v246, 2
    %v248 = vadd.f32 %v246, %v247
    %v249 = vrot.slane %v248, 1
    %v250 = vadd.f32 %v248, %v249
    %vm253 = vcmask 1041409
    %v254 = vsel %vm253, %v250, %v237
    %vm256 = vcmask 58368
    %v257 = vsel %vm256, %v254, -inf
    %258 = vmax.xlane.f32.xlu0 %v257
    %v259 = vpop.xlane.xlu0 %258
    %v261 = vrot.slane %v259, 1
    %v264 = vsub.f32 %v237, %v259
    %v265 = vsub.f32 %v250, %v261
    %v266 = vmul.f32 %v264, 1.442695
    %v267 = vpow.pop %v266
    %v268 = vmul.f32 %v265, 1.442695
    %v269 = vpow.pop %v268
    %v272 = vrot.slane %v269, 7
    %v273 = vsel %vm253, %v272, %v267
    %v275 = vsel %vm256, %v273, 0.0
    %276 = vadd.xlane.f32.xlu0 %v275
    %v277 = vpop.xlane.xlu0 %276
    %v278 = vrcp.pop %v277
    %v280 = vrot.slane %v278, 1
    %v283 = vmul.f32 %v267, %v278
    %v284 = vmul.f32 %v269, %v280
    %v287 = vrot.slane %v284, 7
    %v288 = vsel %vm253, %v287, %v283
    %290 = vst.msk [vmem:[#allocation2] sm:$0x3] %vm256, %v288
    // Predicated region
    $region22: #{tpu_custom_call.1} parent=1 // pred_check
      _
    $region23: #{tpu_custom_call.1} parent=1 // pred_check_branch
      %292 = sbr.rel (0) target = $region25
    $region24: #{tpu_custom_call.1} parent=1 // pred_region
      %294 = vsyncadd [#allocation3], 0
      %s296 = sshll.u32 [#allocation2], 4
      %s297 = int_to_ptr.vmem [resolvable:$true] %s296
      %s298 = sshll.u32 %s5, 4
      %s299 = int_to_ptr.hbm [resolvable:$true] %s298
      %301 = dma.vmem_to_hbm [thread:$0]  %s297, 32, %s299, [#allocation3]
    $region25: #{tpu_custom_call.1} parent=1 // pred_fallthru
      _
    // Predicated region
    $region26: #{tpu_custom_call.1} parent=1 // pred_check
      _
    $region27: #{tpu_custom_call.1} parent=1 // pred_check_branch
      %303 = sbr.rel (0) target = $region29
    $region28: #{tpu_custom_call.1} parent=1 // pred_region
      %305 = dma.done [#allocation3], 32
    $region29: #{tpu_custom_call.1} parent=1 // pred_fallthru
      _
    %306 = vsyncpa [#allocation3], 1

</llo_original>
